<compile_context>
chip_gen: v7x
topology: tpu7x:2x2x1
jax: 0.10.0
libtpu: 0.0.40
codegen_flags: <defaults>
</compile_context>

<pallas_src>
import functools
import inspect

import jax
import jax.numpy as jnp
from jax import lax
from jax.experimental import pallas as pl
from jax.experimental.pallas import tpu as pltpu


def _round_up(x, m):
    return ((x + m - 1) // m) * m


def _cdiv(a, b):
    return (a + b - 1) // b


def _blockspec_supports_pipeline_mode():
    """Capability check (replaces the old broad try/except around the compile)."""
    if not hasattr(pl, "Buffered"):
        return False
    for target in (pl.BlockSpec, getattr(pl.BlockSpec, "__init__", None)):
        if target is None:
            continue
        try:
            if "pipeline_mode" in inspect.signature(target).parameters:
                return True
        except (TypeError, ValueError):
            continue
    return False


_SUPPORTS_PIPELINE_MODE = _blockspec_supports_pipeline_mode()


def _device_info():
    """(vmem_capacity_bytes, multi_tensorcore) with conservative fallbacks."""
    vmem_cap = 128 << 20
    kind = ""
    multi_core = False
    try:
        dev = jax.devices()[0]
        kind = (getattr(dev, "device_kind", "") or "").lower()
        multi_core = getattr(dev, "num_cores", 1) > 1
    except Exception:  # probing only; never fatal
        pass
    got_info = False
    try:
        info = pltpu.get_tpu_info()
        cap = getattr(info, "vmem_capacity_bytes", None)
        if cap:
            vmem_cap = int(cap)
            got_info = True
    except Exception:  # probing only; never fatal
        pass
    if not got_info and "v7" in kind:
        vmem_cap = 64 << 20
    if "v7" in kind:
        multi_core = True
    return vmem_cap, multi_core


def _adapter_kernel(x_ref, w_ref, p_ref, o_ref, *, eps, d_out):
    # x_ref: (TM, D_in) input row tile (native dtype)
    # w_ref: (D_in, D_out_pad) weight, pre-transposed, zero-padded columns
    # p_ref: (8, D_out_pad) packed constants: row0=bias, row1=gamma, row2=beta
    # o_ref: (TM, D_out_pad)
    d_out_pad = o_ref.shape[-1]

    # Linear: MXU matmul in native dtype, f32 accumulation.
    y = jnp.dot(x_ref[...], w_ref[...], preferred_element_type=jnp.float32)
    bias = p_ref[0:1, :].astype(jnp.float32)
    gamma = p_ref[1:2, :].astype(jnp.float32)
    beta = p_ref[2:3, :].astype(jnp.float32)
    y = y + bias

    # LayerNorm over the true feature width (biased variance, torch eps-inside-sqrt).
    inv_d = jnp.float32(1.0 / d_out)
    mean = jnp.sum(y, axis=-1, keepdims=True) * inv_d  # padded cols are exactly 0
    centered = y - mean
    if d_out_pad != d_out:
        col = lax.broadcasted_iota(jnp.int32, (1, d_out_pad), 1)
        centered = jnp.where(col < d_out, centered, 0.0)
    var = jnp.sum(centered * centered, axis=-1, keepdims=True) * inv_d
    scale = lax.rsqrt(var + eps) * gamma            # rsqrt on EUP; gamma folded in
    y_norm = centered * scale + beta

    # ReLU
    o_ref[...] = jnp.maximum(y_norm, 0.0).astype(o_ref.dtype)


def prepare_params(weight, bias, gamma, beta, *, param_dtype=None):
    """One-time parameter prep (hoisted out of the per-call path).

    weight: torch layout (D_out, D_in).  Returns (w_t, packed, d_out) where
      w_t:    (D_in, D_out_pad)   pre-transposed weight, zero lane padding
      packed: (8, D_out_pad)      rows 0/1/2 = bias / ln-gamma / ln-beta
    D_out_pad is a multiple of 128 so output stores are lane-dense; zero pads
    keep the LayerNorm statistics over the true D_out exact.
    param_dtype=jnp.bfloat16 halves weight DMA/VMEM if the model tolerates it.
    """
    d_out, d_in = weight.shape
    d_out_pad = _round_up(d_out, 128)
    pad = d_out_pad - d_out
    if param_dtype is None:
        param_dtype = weight.dtype
    w_t = jnp.pad(weight.T.astype(param_dtype), ((0, 0), (0, pad)))
    packed = jnp.zeros((8, d_out_pad), dtype=param_dtype)
    packed = packed.at[0, :d_out].set(bias.astype(param_dtype))
    packed = packed.at[1, :d_out].set(gamma.astype(param_dtype))
    packed = packed.at[2, :d_out].set(beta.astype(param_dtype))
    return w_t, packed, d_out


@functools.lru_cache(maxsize=64)
def _get_call(bm, n, d_in, d_out_pad, x_dtype_name, p_dtype_name, eps, d_out,
              vmem_limit, single_buffer_consts):
    out_dtype = jnp.dtype(x_dtype_name)
    p_itemsize = jnp.dtype(p_dtype_name).itemsize
    grid_m = _cdiv(n, bm)

    def const_spec(shape):
        if single_buffer_consts:
            return pl.BlockSpec(shape, lambda i: (0, 0),
                                pipeline_mode=pl.Buffered(1))
        return pl.BlockSpec(shape, lambda i: (0, 0))

    cost = pl.CostEstimate(
        flops=2 * n * d_in * d_out_pad + 8 * n * d_out_pad,
        transcendentals=n,  # one rsqrt per row
        bytes_accessed=(n * (d_in + d_out_pad) * out_dtype.itemsize
                        + (d_in * d_out_pad + 8 * d_out_pad) * p_itemsize),
    )

    return pl.pallas_call(
        functools.partial(_adapter_kernel, eps=eps, d_out=d_out),
        out_shape=jax.ShapeDtypeStruct((n, d_out_pad), out_dtype),
        grid_spec=pltpu.PrefetchScalarGridSpec(
            num_scalar_prefetch=0,
            grid=(grid_m,),
            in_specs=[
                pl.BlockSpec((bm, d_in), lambda i: (i, 0)),   # x row tile
                const_spec((d_in, d_out_pad)),                # weight (resident)
                const_spec((8, d_out_pad)),                   # packed bias/gamma/beta
            ],
            out_specs=pl.BlockSpec((bm, d_out_pad), lambda i: (i, 0)),
        ),
        compiler_params=pltpu.CompilerParams(
            dimension_semantics=("parallel",),   # row axis shards across TCs (v7x)
            vmem_limit_bytes=vmem_limit,
        ),
        cost_estimate=cost,
    )


def nonlinear_adapter(x, w_t, packed_params, d_out, *, eps=1e-5, block_m=None):
    """x: (..., D_in). Params as returned by prepare_params(). Returns (..., D_out)."""
    d_in = x.shape[-1]
    d_out_pad = w_t.shape[-1]
    lead_shape = x.shape[:-1]
    x2d = x.reshape(-1, d_in)
    n = x2d.shape[0]

    vmem_cap, multi_core = _device_info()
    x_item = jnp.dtype(x.dtype).itemsize
    p_item = jnp.dtype(w_t.dtype).itemsize
    sub = 8 if x_item >= 4 else (16 if x_item == 2 else 32)

    # Generation-aware row-tile target (mem-bound: 512 ~85%, 1024 ~86% of roofline).
    if block_m is None:
        block_m = 1024 if vmem_cap >= (96 << 20) else 512

    # VMEM budget: ~78% of physical capacity (headroom for compiler scratch),
    # resident weight/constants subtracted first, single-buffered consts
    # counted once, x/out tiles double-buffered.
    budget = int(vmem_cap * 0.78)
    const_bufs = 1 if _SUPPORTS_PIPELINE_MODE else 2
    fixed_bytes = const_bufs * (_round_up(d_in, 8) * d_out_pad + 8 * d_out_pad) * p_item
    per_row = 2 * d_in * x_item + 2 * d_out_pad * x_item
    avail = budget - fixed_bytes - (4 << 20)
    if avail < per_row * sub:
        # TODO(synk): K-tiled accumulator variant for weights that do not fit VMEM.
        raise NotImplementedError(
            f"weight ({fixed_bytes} B resident) does not fit the VMEM budget "
            f"({budget} B); K-tiled variant not implemented")
    bm_fit = max(sub, (avail // per_row) // sub * sub)
    bm_cap = max(sub, min(block_m, bm_fit))

    # Balance tiles; on multi-TC parts make sure the parallel axis has >=4 steps.
    min_tiles = min(4, _cdiv(n, sub)) if multi_core else 1
    num_tiles = max(_cdiv(n, bm_cap), min_tiles, 1)
    bm = max(sub, min(bm_cap, _round_up(_cdiv(n, num_tiles), sub)))

    est = fixed_bytes + per_row * bm
    vmem_limit = int(min(max(est + (8 << 20), 32 << 20), budget))

    call = _get_call(int(bm), int(n), int(d_in), int(d_out_pad),
                     jnp.dtype(x.dtype).name, jnp.dtype(w_t.dtype).name,
                     float(eps), int(d_out), int(vmem_limit),
                     bool(_SUPPORTS_PIPELINE_MODE))
    out = call(x2d, w_t, packed_params)
    return out[:, :d_out].reshape(*lead_shape, d_out)


def _reference(x, weight, bias, gamma, beta, eps=1e-5):
    y = jnp.einsum("...i,oi->...o", x, weight) + bias
    mean = jnp.mean(y, axis=-1, keepdims=True)
    var = jnp.mean((y - mean) ** 2, axis=-1, keepdims=True)
    y = (y - mean) / jnp.sqrt(var + eps)
    y = y * gamma + beta
    return jnp.maximum(y, 0.0)


if __name__ == "__main__":
    key = jax.random.PRNGKey(0)
    batch, seq = 2, 8
    d_in, d_out = 32, 64

    k_x, k_w, k_b = jax.random.split(key, 3)
    x = jax.random.normal(k_x, (batch, seq, d_in), dtype=jnp.float32)

    # Deterministic parameter init (mimics nn.Linear uniform(-1/sqrt(in), 1/sqrt(in)))
    bound = 1.0 / (d_in ** 0.5)
    weight = jax.random.uniform(k_w, (d_out, d_in), minval=-bound, maxval=bound,
                                dtype=jnp.float32)
    bias = jax.random.uniform(k_b, (d_out,), minval=-bound, maxval=bound,
                              dtype=jnp.float32)
    gamma = jnp.ones((d_out,), dtype=jnp.float32)   # nn.LayerNorm weight init
    beta = jnp.zeros((d_out,), dtype=jnp.float32)   # nn.LayerNorm bias init

    # One-time param prep (transpose + lane padding + constant packing).
    w_t, packed, d_out_true = prepare_params(weight, bias, gamma, beta)

    out = nonlinear_adapter(x, w_t, packed, d_out_true)
    out = jax.block_until_ready(out)

    ref = _reference(x, weight, bias, gamma, beta)
    assert out.shape == (batch, seq, d_out)
    assert jnp.allclose(out, ref, atol=1e-5, rtol=1e-5), "mismatch vs reference"

    print("KERNEL_OK")
</pallas_src>

<mosaic_0001>
module attributes {stable_mosaic.version = 11 : i64} {
  func.func @_adapter_kernel(%arg0: i32, %arg1: memref<16x32xf32, #tpu.memory_space<vmem>>, %arg2: memref<32x128xf32, #tpu.memory_space<vmem>>, %arg3: memref<8x128xf32, #tpu.memory_space<vmem>>, %arg4: memref<16x128xf32, #tpu.memory_space<vmem>>) attributes {dimension_semantics = [#tpu.dimension_semantics<parallel>], iteration_bounds = array<i64: 1>, scalar_prefetch = 0 : i64, scratch_operands = 0 : i64, tpu.core_type = #tpu.core_type<tc>, window_params = [{transform_indices = @transform_0, window_bounds = array<i64: 16, 32>}, {pipeline_mode = #tpu.pipeline_mode<synchronous>, transform_indices = @transform_1, window_bounds = array<i64: 32, 128>}, {pipeline_mode = #tpu.pipeline_mode<synchronous>, transform_indices = @transform_2, window_bounds = array<i64: 8, 128>}, {transform_indices = @transform_3, window_bounds = array<i64: 16, 128>}]} {
    %c0 = arith.constant 0 : index
    %c0_0 = arith.constant 0 : index
    %0 = vector.load %arg1[%c0, %c0_0] : memref<16x32xf32, #tpu.memory_space<vmem>>, vector<16x32xf32>
    %c0_1 = arith.constant 0 : index
    %c0_2 = arith.constant 0 : index
    %1 = vector.load %arg2[%c0_1, %c0_2] : memref<32x128xf32, #tpu.memory_space<vmem>>, vector<32x128xf32>
    %cst = arith.constant dense<0.000000e+00> : vector<16x128xf32>
    %2 = tpu.matmul %0, %1, %cst {dimension_numbers = #tpu.dot_dimension_numbers<[1], [0], [0], [1], [0, 0, 1, 1], [], []>} : vector<16x32xf32>, vector<32x128xf32>, vector<16x128xf32> -> vector<16x128xf32>
    %c0_3 = arith.constant 0 : index
    %c0_4 = arith.constant 0 : index
    %3 = vector.load %arg3[%c0_3, %c0_4] : memref<8x128xf32, #tpu.memory_space<vmem>>, vector<1x128xf32>
    %c1 = arith.constant 1 : index
    %c0_5 = arith.constant 0 : index
    %4 = vector.load %arg3[%c1, %c0_5] : memref<8x128xf32, #tpu.memory_space<vmem>>, vector<1x128xf32>
    %c2 = arith.constant 2 : index
    %c0_6 = arith.constant 0 : index
    %5 = vector.load %arg3[%c2, %c0_6] : memref<8x128xf32, #tpu.memory_space<vmem>>, vector<1x128xf32>
    %6 = vector.broadcast %3 : vector<1x128xf32> to vector<16x128xf32>
    %7 = arith.addf %2, %6 : vector<16x128xf32>
    %cst_7 = arith.constant dense<0.000000e+00> : vector<16xf32>
    %8 = vector.multi_reduction <add>, %7, %cst_7 [1] : vector<16x128xf32> to vector<16xf32>
    %9 = vector.shape_cast %8 : vector<16xf32> to vector<16x1xf32>
    %cst_8 = arith.constant 1.562500e-02 : f32
    %10 = vector.broadcast %cst_8 : f32 to vector<16x1xf32>
    %11 = arith.mulf %9, %10 : vector<16x1xf32>
    %12 = vector.broadcast %11 : vector<16x1xf32> to vector<16x128xf32>
    %13 = arith.subf %7, %12 : vector<16x128xf32>
    %14 = tpu.iota {dimensions = array<i32: 1>} : vector<1x128xi32>
    %c64_i32 = arith.constant 64 : i32
    %15 = vector.broadcast %c64_i32 : i32 to vector<1x128xi32>
    %16 = arith.cmpi slt, %14, %15 : vector<1x128xi32>
    %cst_9 = arith.constant 0.000000e+00 : f32
    %17 = vector.shape_cast %16 : vector<1x128xi1> to vector<1x128xi1>
    %18 = vector.broadcast %17 : vector<1x128xi1> to vector<16x128xi1>
    %19 = vector.broadcast %cst_9 : f32 to vector<16x128xf32>
    %20 = arith.select %18, %13, %19 : vector<16x128xi1>, vector<16x128xf32>
    %21 = arith.mulf %20, %20 : vector<16x128xf32>
    %cst_10 = arith.constant dense<0.000000e+00> : vector<16xf32>
    %22 = vector.multi_reduction <add>, %21, %cst_10 [1] : vector<16x128xf32> to vector<16xf32>
    %23 = vector.shape_cast %22 : vector<16xf32> to vector<16x1xf32>
    %cst_11 = arith.constant 1.562500e-02 : f32
    %24 = vector.broadcast %cst_11 : f32 to vector<16x1xf32>
    %25 = arith.mulf %23, %24 : vector<16x1xf32>
    %cst_12 = arith.constant 9.99999974E-6 : f32
    %26 = vector.broadcast %cst_12 : f32 to vector<16x1xf32>
    %27 = arith.addf %25, %26 : vector<16x1xf32>
    %28 = math.rsqrt %27 : vector<16x1xf32>
    %29 = vector.broadcast %28 : vector<16x1xf32> to vector<16x128xf32>
    %30 = vector.broadcast %4 : vector<1x128xf32> to vector<16x128xf32>
    %31 = arith.mulf %29, %30 : vector<16x128xf32>
    %32 = arith.mulf %20, %31 : vector<16x128xf32>
    %33 = vector.broadcast %5 : vector<1x128xf32> to vector<16x128xf32>
    %34 = arith.addf %32, %33 : vector<16x128xf32>
    %cst_13 = arith.constant 0.000000e+00 : f32
    %35 = vector.broadcast %cst_13 : f32 to vector<16x128xf32>
    %36 = arith.maximumf %34, %35 : vector<16x128xf32>
    %c0_14 = arith.constant 0 : index
    %c0_15 = arith.constant 0 : index
    %37 = vector.load %arg4[%c0_14, %c0_15] : memref<16x128xf32, #tpu.memory_space<vmem>>, vector<16x128xf32>
    tpu.vector_store %arg4[%c0_14, %c0_15], %36 {strides = array<i32>} : memref<16x128xf32, #tpu.memory_space<vmem>>, vector<16x128xf32>,
    return
  }
  func.func @transform_0(%arg0: i32) -> (i32, i32) {
    %c0_i32 = arith.constant 0 : i32
    %c0_i32_0 = arith.constant 0 : i32
    return %arg0, %c0_i32 : i32, i32
  }
  func.func @transform_1(%arg0: i32) -> (i32, i32) {
    %c0_i32 = arith.constant 0 : i32
    %c0_i32_0 = arith.constant 0 : i32
    %c0_i32_1 = arith.constant 0 : i32
    return %c0_i32, %c0_i32_0 : i32, i32
  }
  func.func @transform_2(%arg0: i32) -> (i32, i32) {
    %c0_i32 = arith.constant 0 : i32
    %c0_i32_0 = arith.constant 0 : i32
    %c0_i32_1 = arith.constant 0 : i32
    return %c0_i32, %c0_i32_0 : i32, i32
  }
  func.func @transform_3(%arg0: i32) -> (i32, i32) {
    %c0_i32 = arith.constant 0 : i32
    %c0_i32_0 = arith.constant 0 : i32
    return %arg0, %c0_i32 : i32, i32
  }
}

</mosaic_0001>

<llo_original>
// kernel: tpu_custom_call.1
$region0: #{tpu_custom_call.1}
  #allocation0 [shape = 'u32[]', space=smem, size = 0x4, offset = 0x4, fixed_abs, tag = 'smem constant byte address 0x4 - core index']
  #allocation1 [shape = 'u32[144,128]{1,0:T(1,128)}', space=vmem, size = 0x12000, scoped, tag = 'internal scratch']
  %s0 = inlined_call_operand.hbm [shape: f32[16,32], index: 0, kind: input, shape index: {}]
  %s1 = inlined_call_operand.hbm [shape: f32[32,128], index: 1, kind: input, shape index: {}]
  %s2 = inlined_call_operand.hbm [shape: f32[8,128], index: 2, kind: input, shape index: {}]
  %s3 = inlined_call_operand.hbm [shape: f32[16,128], index: 3, kind: output, shape index: {}]
  %s4 = sld [smem:[#allocation0]]
  $region34: #{tpu_custom_call.1} parent=0
    _
  %s6 = ssub.s32 1, %s4
  %s7 = scalar_select 0, %s6, %s4
  $region1: #{tpu_custom_call.1} parent=0
    #allocation2 [shape = 'u8[8192]{0}', space=vmem, size = 0x2000, scoped, tag = 'input window, operand 0, single buffered']
    #allocation3 [shape = 's32[1]{0}', space=sflag, size = 0x4, scoped, tag = 'scoped memory for tpu_custom_call.1']
    #allocation4 [shape = 's32[1]{0}', space=sflag, size = 0x4, scoped, tag = 'scoped memory for tpu_custom_call.1']
    #allocation5 [shape = 'u8[16384]{0}', space=vmem, size = 0x4000, scoped, tag = 'input window, operand 1, single buffered']
    #allocation6 [shape = 's32[1]{0}', space=sflag, size = 0x4, scoped, tag = 'scoped memory for tpu_custom_call.1']
    #allocation7 [shape = 'u8[4096]{0}', space=vmem, size = 0x1000, scoped, tag = 'input window, operand 2, single buffered']
    #allocation8 [shape = 'u8[8192]{0}', space=vmem, size = 0x2000, scoped, tag = 'output window, operand 0, single buffered']
    %8 = vsyncpa [#allocation3], 0
    %9 = vsyncpa [#allocation6], 0
    %10 = vsyncpa [#allocation4], 0
    // Predicated region
    $region2: #{tpu_custom_call.1} parent=1 // pred_check
      _
    $region3: #{tpu_custom_call.1} parent=1 // pred_check_branch
      %12 = sbr.rel (0) target = $region5
    $region4: #{tpu_custom_call.1} parent=1 // pred_region
      %s14 = ssub.s32 256, 256
      %15 = vsyncadd [#allocation3], %s14
      %s16 = sshll.u32 [#allocation2], 4
      %s17 = int_to_ptr.vmem [resolvable:$true] %s16
      %22 = dma.hbm_to_vmem [thread:$0]  %s0, 256, %s17, [#allocation3], 128, 128, 8
    $region5: #{tpu_custom_call.1} parent=1 // pred_fallthru
      _
    // Predicated region
    $region6: #{tpu_custom_call.1} parent=1 // pred_check
      _
    $region7: #{tpu_custom_call.1} parent=1 // pred_check_branch
      %24 = sbr.rel (0) target = $region9
    $region8: #{tpu_custom_call.1} parent=1 // pred_region
      %s26 = ssub.s32 512, 512
      %27 = vsyncadd [#allocation6], %s26
      %s28 = sshll.u32 [#allocation5], 4
      %s29 = int_to_ptr.vmem [resolvable:$true] %s28
      %34 = dma.hbm_to_vmem [thread:$0]  %s1, 512, %s29, [#allocation6], 128, 128, 8
    $region9: #{tpu_custom_call.1} parent=1 // pred_fallthru
      _
    // Predicated region
    $region10: #{tpu_custom_call.1} parent=1 // pred_check
      _
    $region11: #{tpu_custom_call.1} parent=1 // pred_check_branch
      %36 = sbr.rel (0) target = $region13
    $region12: #{tpu_custom_call.1} parent=1 // pred_region
      %s38 = ssub.s32 128, 128
      %39 = vsyncadd [#allocation6], %s38
      %s41 = sshll.u32 [#allocation7], 4
      %s42 = int_to_ptr.vmem [resolvable:$true] %s41
      %44 = dma.hbm_to_vmem [thread:$0]  %s2, 128, %s42, [#allocation6]
    $region13: #{tpu_custom_call.1} parent=1 // pred_fallthru
      _
    // Predicated region
    $region14: #{tpu_custom_call.1} parent=1 // pred_check
      _
    $region15: #{tpu_custom_call.1} parent=1 // pred_check_branch
      %46 = sbr.rel (0) target = $region17
    $region16: #{tpu_custom_call.1} parent=1 // pred_region
      %47 = dma.done [#allocation3], 256
    $region17: #{tpu_custom_call.1} parent=1 // pred_fallthru
      _
    // Predicated region
    $region18: #{tpu_custom_call.1} parent=1 // pred_check
      _
    $region19: #{tpu_custom_call.1} parent=1 // pred_check_branch
      %49 = sbr.rel (0) target = $region21
    $region20: #{tpu_custom_call.1} parent=1 // pred_region
      %50 = dma.done [#allocation6], 512
    $region21: #{tpu_custom_call.1} parent=1 // pred_fallthru
      _
    // Predicated region
    $region22: #{tpu_custom_call.1} parent=1 // pred_check
      _
    $region23: #{tpu_custom_call.1} parent=1 // pred_check_branch
      %52 = sbr.rel (0) target = $region25
    $region24: #{tpu_custom_call.1} parent=1 // pred_region
      %53 = dma.done [#allocation6], 128
    $region25: #{tpu_custom_call.1} parent=1 // pred_fallthru
      _
    %v54 = vld [vmem:[#allocation2] sm:$0xff]
    %v55 = vld [vmem:[#allocation2 + $0x8] sm:$0xff]
    %v56 = vld [vmem:[#allocation5] sm:$0xff]
    %v57 = vld [vmem:[#allocation5 + $0x8] sm:$0xff]
    %v58 = vld [vmem:[#allocation5 + $0x10] sm:$0xff]
    %v59 = vld [vmem:[#allocation5 + $0x18] sm:$0xff]
    %v60 = vld [vmem:[#allocation7] sm:$0x1]
    %v61 = vld [vmem:[#allocation7 + $0x1] sm:$0x1]
    %v62 = vld [vmem:[#allocation7 + $0x2] sm:$0x1]
    %v63 = vlaneseq
    %v64 = vshrl.u32 %v63, 7
    %v65 = vsub.s32 0, %v64
    %v66 = vrot.slane %v60, %v65
    %vm67 = vcmask 261120
    %v69 = vsel %vm67, %v54, 0
    %v72 = vsel %vm67, %v55, 0
    %74 = vmatprep.subr.mxu0 0.0
    %75 = vmatpush1.msra.mxu0 %v56
    %76 = vmatprep.subr.mxu0 0.0
    %77 = vmatpush1.msra.mxu0 %v57
    %78 = vmatprep.subr.mxu0 0.0
    %79 = vmatpush1.msra.mxu0 %v58
    %80 = vmatprep.subr.mxu0 0.0
    %81 = vmatpush1.msra.mxu0 %v59
    %82 = vmatprep.subr.mxu0 0.0
    %83 = vmatpush1.msra.mxu0 0.0
    %84 = vmatprep.subr.mxu0 0.0
    %85 = vmatpush1.msra.mxu0 0.0
    %86 = vmatprep.subr.mxu0 0.0
    %87 = vmatpush1.msra.mxu0 0.0
    %88 = vmatprep.subr.mxu0 0.0
    %89 = vmatpush1.msra.mxu0 0.0
    %90 = vmatprep.subr.mxu0 0.0
    %91 = vmatpush1.msra.mxu0 0.0
    %92 = vmatprep.subr.mxu0 0.0
    %93 = vmatpush1.msra.mxu0 0.0
    %94 = vmatprep.subr.mxu0 0.0
    %95 = vmatpush1.msra.mxu0 0.0
    %96 = vmatprep.subr.mxu0 0.0
    %97 = vmatpush1.msra.mxu0 0.0
    %98 = vmatprep.subr.mxu0 0.0
    %99 = vmatpush1.msra.mxu0 0.0
    %100 = vmatprep.subr.mxu0 0.0
    %101 = vmatpush1.msra.mxu0 0.0
    %102 = vmatprep.subr.mxu0 0.0
    %103 = vmatpush1.msra.mxu0 0.0
    %104 = vmatprep.subr.mxu0 0.0
    %105 = vmatpush1.msra.mxu0 0.0
    %106 = vmatprep.subr.mxu0 0.0
    %107 = vmatpush1.msra.mxu0 0.0
    %108 = vmatprep.subr.mxu0 0.0
    %109 = vmatpush1.msra.mxu0 0.0
    %110 = vmatprep.subr.mxu0 0.0
    %111 = vmatpush1.msra.mxu0 0.0
    %112 = vmatprep.subr.mxu0 0.0
    %113 = vmatpush1.msra.mxu0 0.0
    %114 = vmatprep.subr.mxu0 0.0
    %115 = vmatpush1.msra.mxu0 0.0
    %116 = vmatprep.subr.mxu0 0.0
    %117 = vmatpush1.msra.mxu0 0.0
    %118 = vmatprep.subr.mxu0 0.0
    %119 = vmatpush1.msra.mxu0 0.0
    %120 = vmatprep.subr.mxu0 0.0
    %121 = vmatpush1.msra.mxu0 0.0
    %122 = vmatprep.subr.mxu0 0.0
    %123 = vmatpush1.msra.mxu0 0.0
    %124 = vmatprep.subr.mxu0 0.0
    %125 = vmatpush1.msra.mxu0 0.0
    %126 = vmatprep.subr.mxu0 0.0
    %127 = vmatpush1.msra.mxu0 0.0
    %128 = vmatprep.subr.mxu0 0.0
    %129 = vmatpush1.msra.mxu0 0.0
    %130 = vmatprep.subr.mxu0 0.0
    %131 = vmatpush1.msra.mxu0 0.0
    %132 = vmatprep.subr.mxu0 0.0
    %133 = vmatpush1.msra.mxu0 0.0
    %134 = vmatprep.subr.mxu0 0.0
    %135 = vmatpush1.msra.mxu0 0.0
    %136 = vmatprep.subr.mxu0 0.0
    %137 = vmatpush1.msra.mxu0 0.0
    %138 = vmatprep.mubr.f32.mxu0 0.0
    %139 = vmatmul.mubr.f32.gmra.mrb[0].mxu0 %v69
    %v140 = vpop.f32.mrb[0].mxu0
    %v141 = vadd.f32 %v66, %v140
    %v142 = vpop.f32.mrb[0].mxu0
    %143 = vmatprep.mubr.f32.mxu0 0.0
    %144 = vmatmul.mubr.f32.gmra.mrb[0].mxu0 %v72
    %v145 = vpop.f32.mrb[0].mxu0
    %v146 = vadd.f32 %v66, %v145
    %v147 = vpop.f32.mrb[0].mxu0
    %148 = vdwg.mxu0
    %149 = vadd.xlane.f32.xlu0 %v141
    %v150 = vpop.xlane.xlu0 %149
    %151 = vadd.xlane.f32.xlu0 %v146
    %v152 = vpop.xlane.xlu0 %151
    %v153 = vmul.f32 %v150, 0.015625
    %v154 = vmul.f32 %v152, 0.015625
    %v155 = vsub.f32 %v141, %v153
    %v156 = vsub.f32 %v146, %v154
    %v157 = vlaneseq
    %v158 = vand.u32 %v157, 127
    %vm159 = vcmp.lt.s32.totalorder %v158, 64
    %v160 = vsel %vm159, 1, 0
    %vm161 = vcmp.eq.s32.totalorder %v160, 1
    %v162 = vsel %vm161, %v155, 0.0
    %v163 = vsel %vm161, %v156, 0.0
    %v164 = vmul.f32 %v162, %v162
    %v165 = vmul.f32 %v163, %v163
    %166 = vadd.xlane.f32.xlu0 %v164
    %v167 = vpop.xlane.xlu0 %166
    %168 = vadd.xlane.f32.xlu0 %v165
    %v169 = vpop.xlane.xlu0 %168
    %v170 = vmul.f32 %v167, 0.015625
    %v171 = vmul.f32 %v169, 0.015625
    %v172 = vadd.f32 %v170, 1e-05
    %v173 = vadd.f32 %v171, 1e-05
    %v174 = vrsqrt.pop %v172
    %v175 = vrsqrt.pop %v173
    %v176 = vlaneseq
    %v177 = vshrl.u32 %v176, 7
    %v178 = vsub.s32 0, %v177
    %v179 = vrot.slane %v61, %v178
    %v180 = vmul.f32 %v174, %v179
    %v181 = vmul.f32 %v175, %v179
    %v182 = vmul.f32 %v162, %v180
    %v183 = vmul.f32 %v163, %v181
    %v184 = vlaneseq
    %v185 = vshrl.u32 %v184, 7
    %v186 = vsub.s32 0, %v185
    %v187 = vrot.slane %v62, %v186
    %v188 = vadd.f32 %v182, %v187
    %v189 = vadd.f32 %v183, %v187
    %v190 = vmax.f32 %v188, 0.0
    %v191 = vmax.f32 %v189, 0.0
    %192 = vst [vmem:[#allocation8] sm:$0xff] %v190
    %193 = vst [vmem:[#allocation8 + $0x8] sm:$0xff] %v191
    // Predicated region
    $region26: #{tpu_custom_call.1} parent=1 // pred_check
      _
    $region27: #{tpu_custom_call.1} parent=1 // pred_check_branch
      %195 = sbr.rel (0) target = $region29
    $region28: #{tpu_custom_call.1} parent=1 // pred_region
      %s197 = ssub.s32 256, 256
      %198 = vsyncadd [#allocation4], %s197
      %s199 = sshll.u32 [#allocation8], 4
      %s200 = int_to_ptr.vmem [resolvable:$true] %s199
      %205 = dma.vmem_to_hbm [thread:$0]  %s200, 256, %s3, [#allocation4], 128, 128, 8
    $region29: #{tpu_custom_call.1} parent=1 // pred_fallthru
      _
    // Predicated region
    $region30: #{tpu_custom_call.1} parent=1 // pred_check
      _
    $region31: #{tpu_custom_call.1} parent=1 // pred_check_branch
      %207 = sbr.rel (0) target = $region33
    $region32: #{tpu_custom_call.1} parent=1 // pred_region
      %208 = dma.done [#allocation4], 256
    $region33: #{tpu_custom_call.1} parent=1 // pred_fallthru
      _
    %209 = vsyncpa [#allocation3], 1
    %210 = vsyncpa [#allocation6], 1
    %211 = vsyncpa [#allocation4], 1

</llo_original>
